<compile_context>
chip_gen: v7x
topology: tpu7x:2x2x1
jax: 0.10.0
libtpu: 0.0.40
codegen_flags: <defaults>
</compile_context>

<pallas_src>
import jax
import jax.numpy as jnp
from jax.experimental import pallas as pl
from jax.experimental.pallas import tpu as pltpu


def _round_up(x, m):
    return (x + m - 1) // m * m


def _make_tempcnn_kernel(L_out, C_in, K):
    KC = K * C_in

    def kernel(x_ref, cw_ref, cb_ref, w1_ref, b1_ref, w2_ref, b2_ref, out_ref):
        # x_ref : (TB, L*C_in) bf16   flattened channels-last activations (lane-dense)
        # cw_ref: (K*C_in, F)  bf16   conv weight, rows ordered (tap-major, channel-minor)
        # cb_ref: (1, F) f32          conv bias
        # w1_ref: (F, H) bf16, b1_ref: (1, H) f32          fc1
        # w2_ref: (H, A_pad) bf16, b2_ref: (1, A_pad) f32  fc2 (lane-padded to 128;
        #         pad columns carry -1e30 bias so they drop out of the softmax)
        # out_ref: (TB, A_pad) f32 log-probabilities (pad lanes sliced off in wrapper)
        x = x_ref[...]                       # (TB, L*C_in) bf16
        cw = cw_ref[...]                     # (KC, F) bf16

        # ---- Conv1d + global max-pool: L_out shifted-window dots, running VPU max ----
        pooled = None
        for l in range(L_out):               # small static unroll (L_out = L - K + 1)
            win = x[:, l * C_in:l * C_in + KC]                       # (TB, KC) bf16
            part = jnp.dot(win, cw, preferred_element_type=jnp.float32)  # (TB, F) f32
            pooled = part if pooled is None else jnp.maximum(pooled, part)

        # ---- bias + ReLU after the max (commutes: bias const over L, relu monotone) ----
        pooled = jnp.maximum(pooled + cb_ref[...], 0.0)              # (TB, F) f32

        # ---- fc1 -> ReLU -> fc2 -> log_softmax (bf16 MXU operands, f32 math) ----
        h = jnp.maximum(
            jnp.dot(pooled.astype(jnp.bfloat16), w1_ref[...],
                    preferred_element_type=jnp.float32) + b1_ref[...], 0.0)   # (TB, H)
        logits = jnp.dot(h.astype(jnp.bfloat16), w2_ref[...],
                         preferred_element_type=jnp.float32) + b2_ref[...]    # (TB, A_pad)
        m = jnp.max(logits, axis=-1, keepdims=True)
        lse = jnp.log(jnp.sum(jnp.exp(logits - m), axis=-1, keepdims=True))
        out_ref[...] = (logits - m - lse).astype(out_ref.dtype)

    return kernel


def temp_classifier_forward(word_idx, sdist_idx, tdist_idx, params, *, tile_b=2048):
    """Glue: embedding lookups in plain JAX, whole CNN/FC head in the Pallas kernel."""
    word_emb = params["word_emb"]     # (wvocab, word_dim), row 0 zeroed (padding_idx=0)
    pos_emb = params["pos_emb"]       # (pos_size, pos_dim), row 0 zeroed
    conv_w = params["conv_w"]         # (K, C_in, F)  (torch (F, C_in, K) transposed)
    conv_b = params["conv_b"]         # (1, F)
    fc1_w, fc1_b = params["fc1_w"], params["fc1_b"]   # (F, H), (1, H)
    fc2_w, fc2_b = params["fc2_w"], params["fc2_b"]   # (H, A), (1, A)

    # TODO(synk): embedding gather kept in JAX (data-dependent gather kernel not needed here).
    e_word = jnp.take(word_emb, word_idx, axis=0)            # (B, L, word_dim)
    e_sd = jnp.take(pos_emb, sdist_idx, axis=0)              # (B, L, pos_dim)
    e_td = jnp.take(pos_emb, tdist_idx, axis=0)              # (B, L, pos_dim)
    x = jnp.concatenate([e_word, e_sd, e_td], axis=2)        # (B, L, C_in) channels-last

    B, L, C_in = x.shape
    K, _, F = conv_w.shape
    H = fc1_w.shape[1]
    A = fc2_w.shape[1]
    L_out = L - K + 1                                        # kernel_dim
    KC = K * C_in
    LC = L * C_in                                            # 256 at demo shapes -> lane-dense

    # ---- flatten (no im2col expansion); cast the only large tensor to bf16 pre-DMA ----
    x2d = x.reshape(B, LC).astype(jnp.bfloat16)              # (B, L*C_in)

    # ---- batch tiling: >=4 grid steps when batch allows (v7x megacore), cap by tile_b ----
    B8 = _round_up(B, 8)
    tb = min(tile_b, max(8, _round_up(pl.cdiv(B8, 4), 8)))
    B_pad = _round_up(B, tb)
    if B_pad != B:
        x2d = jnp.pad(x2d, ((0, B_pad - B), (0, 0)))         # zero rows, sliced off later

    # ---- lane-dense classifier head: pad fc2 to 128 output lanes ----
    A_pad = _round_up(max(A, 128), 128)
    w2p = jnp.zeros((H, A_pad), jnp.float32).at[:, :A].set(fc2_w).astype(jnp.bfloat16)
    b2p = jnp.full((1, A_pad), -1e30, jnp.float32).at[:, :A].set(fc2_b)

    cw2d = conv_w.reshape(KC, F).astype(jnp.bfloat16)        # rows: tap-major, channel-minor
    w1 = fc1_w.astype(jnp.bfloat16)

    out = pl.pallas_call(
        _make_tempcnn_kernel(L_out, C_in, K),
        out_shape=jax.ShapeDtypeStruct((B_pad, A_pad), jnp.float32),
        grid_spec=pltpu.PrefetchScalarGridSpec(
            num_scalar_prefetch=0,
            grid=(B_pad // tb,),
            in_specs=[
                pl.BlockSpec((tb, LC), lambda i: (i, 0)),     # batch-tiled, lane-dense input
                pl.BlockSpec((KC, F), lambda i: (0, 0)),      # resident weights
                pl.BlockSpec((1, F), lambda i: (0, 0)),
                pl.BlockSpec((F, H), lambda i: (0, 0)),
                pl.BlockSpec((1, H), lambda i: (0, 0)),
                pl.BlockSpec((H, A_pad), lambda i: (0, 0)),
                pl.BlockSpec((1, A_pad), lambda i: (0, 0)),
            ],
            out_specs=pl.BlockSpec((tb, A_pad), lambda i: (i, 0)),
        ),
        compiler_params=pltpu.CompilerParams(
            dimension_semantics=("parallel",),
            vmem_limit_bytes=48 * 1024 * 1024),
    )(x2d, cw2d, conv_b, w1, fc1_b, w2p, b2p)
    return out[:B, :A]


def _reference_forward(word_idx, sdist_idx, tdist_idx, p, cast_bf16=False):
    """Pure-JAX reference mirroring the PyTorch graph (optionally bf16-quantized matmuls)."""
    e = jnp.concatenate([jnp.take(p["word_emb"], word_idx, axis=0),
                         jnp.take(p["pos_emb"], sdist_idx, axis=0),
                         jnp.take(p["pos_emb"], tdist_idx, axis=0)], axis=2)  # (B, L, C)
    K, C_in, F = p["conv_w"].shape
    L_out = e.shape[1] - K + 1
    patches = jnp.concatenate([e[:, j:j + L_out, :] for j in range(K)], axis=2)
    w2d = p["conv_w"].reshape(K * C_in, F)
    fc1_w, fc2_w = p["fc1_w"], p["fc2_w"]
    if cast_bf16:
        patches = patches.astype(jnp.bfloat16)
        w2d = w2d.astype(jnp.bfloat16)
        fc1_w = fc1_w.astype(jnp.bfloat16)
        fc2_w = fc2_w.astype(jnp.bfloat16)
    conv = jnp.einsum("blc,cf->blf", patches, w2d,
                      preferred_element_type=jnp.float32)               # (B, L_out, F)
    conv = jax.nn.relu(conv + p["conv_b"][0])
    pooled = jnp.max(conv, axis=1)                                      # (B, F)
    p_in = pooled.astype(jnp.bfloat16) if cast_bf16 else pooled
    h = jax.nn.relu(jnp.dot(p_in, fc1_w, preferred_element_type=jnp.float32)
                    + p["fc1_b"][0])
    h_in = h.astype(jnp.bfloat16) if cast_bf16 else h
    logits = jnp.dot(h_in, fc2_w, preferred_element_type=jnp.float32) + p["fc2_b"][0]
    return jax.nn.log_softmax(logits, axis=1)


if __name__ == "__main__":
    # Small, forward-consistent shapes.
    B, L = 2, 8                     # batch, max_sdp_len
    wvocab, pos_size = 50, 20
    word_dim, pos_dim = 16, 8
    C_in = word_dim + 2 * pos_dim   # word_sdp + sour_dist_sdp + targ_dist_sdp = 32
    filter_nb, kernel_len = 32, 3
    fc_hidden, action_size = 32, 4

    key = jax.random.PRNGKey(0)
    ks = jax.random.split(key, 10)

    word_emb = 0.1 * jax.random.normal(ks[0], (wvocab, word_dim), jnp.float32)
    word_emb = word_emb.at[0].set(0.0)                      # padding_idx=0
    pos_emb = 0.1 * jax.random.normal(ks[1], (pos_size, pos_dim), jnp.float32)
    pos_emb = pos_emb.at[0].set(0.0)                        # padding_idx=0

    # Conv1d weight in torch layout (F, C_in, K) -> kernel layout (K, C_in, F).
    conv_w_t = 0.1 * jax.random.normal(ks[2], (filter_nb, C_in, kernel_len), jnp.float32)
    conv_w = jnp.transpose(conv_w_t, (2, 1, 0))             # (K, C_in, F)
    conv_b = 0.1 * jax.random.normal(ks[3], (1, filter_nb), jnp.float32)

    fc1_w = 0.1 * jax.random.normal(ks[4], (filter_nb, fc_hidden), jnp.float32)
    fc1_b = 0.1 * jax.random.normal(ks[5], (1, fc_hidden), jnp.float32)
    fc2_w = 0.1 * jax.random.normal(ks[6], (fc_hidden, action_size), jnp.float32)
    fc2_b = 0.1 * jax.random.normal(ks[7], (1, action_size), jnp.float32)

    params = dict(word_emb=word_emb, pos_emb=pos_emb,
                  conv_w=conv_w, conv_b=conv_b,
                  fc1_w=fc1_w, fc1_b=fc1_b, fc2_w=fc2_w, fc2_b=fc2_b)

    word_idx = jax.random.randint(ks[8], (B, L), 0, wvocab, jnp.int32)
    dist_idx = jax.random.randint(ks[9], (2, B, L), 0, pos_size, jnp.int32)
    sdist_idx, tdist_idx = dist_idx[0], dist_idx[1]

    out = jax.jit(temp_classifier_forward)(word_idx, sdist_idx, tdist_idx, params)
    out = jax.block_until_ready(out)

    assert out.shape == (B, action_size)
    # Tight check vs a reference using the same bf16-quantized matmul operands.
    ref_q = _reference_forward(word_idx, sdist_idx, tdist_idx, params, cast_bf16=True)
    assert jnp.allclose(out, ref_q, atol=5e-4, rtol=5e-4), "mismatch vs bf16-quantized reference"
    # Loose check vs the pure-f32 PyTorch-semantics reference (bf16 operand quantization).
    ref_f = _reference_forward(word_idx, sdist_idx, tdist_idx, params, cast_bf16=False)
    assert jnp.allclose(out, ref_f, atol=5e-2, rtol=5e-2), "mismatch vs f32 reference"

    print("KERNEL_OK")
</pallas_src>

<mosaic_0001>
module attributes {stable_mosaic.version = 11 : i64} {
  func.func @kernel(%arg0: i32, %arg1: memref<8x256xbf16, #tpu.memory_space<vmem>>, %arg2: memref<96x32xbf16, #tpu.memory_space<vmem>>, %arg3: memref<1x32xf32, #tpu.memory_space<vmem>>, %arg4: memref<32x32xbf16, #tpu.memory_space<vmem>>, %arg5: memref<1x32xf32, #tpu.memory_space<vmem>>, %arg6: memref<32x128xbf16, #tpu.memory_space<vmem>>, %arg7: memref<1x128xf32, #tpu.memory_space<vmem>>, %arg8: memref<8x128xf32, #tpu.memory_space<vmem>>) attributes {dimension_semantics = [#tpu.dimension_semantics<parallel>], iteration_bounds = array<i64: 1>, scalar_prefetch = 0 : i64, scratch_operands = 0 : i64, tpu.core_type = #tpu.core_type<tc>, window_params = [{transform_indices = @transform_0, window_bounds = array<i64: 8, 256>}, {pipeline_mode = #tpu.pipeline_mode<synchronous>, transform_indices = @transform_1, window_bounds = array<i64: 96, 32>}, {pipeline_mode = #tpu.pipeline_mode<synchronous>, transform_indices = @transform_2, window_bounds = array<i64: 1, 32>}, {pipeline_mode = #tpu.pipeline_mode<synchronous>, transform_indices = @transform_3, window_bounds = array<i64: 32, 32>}, {pipeline_mode = #tpu.pipeline_mode<synchronous>, transform_indices = @transform_4, window_bounds = array<i64: 1, 32>}, {pipeline_mode = #tpu.pipeline_mode<synchronous>, transform_indices = @transform_5, window_bounds = array<i64: 32, 128>}, {pipeline_mode = #tpu.pipeline_mode<synchronous>, transform_indices = @transform_6, window_bounds = array<i64: 1, 128>}, {transform_indices = @transform_7, window_bounds = array<i64: 8, 128>}]} {
    %c0 = arith.constant 0 : index
    %c0_0 = arith.constant 0 : index
    %0 = vector.load %arg1[%c0, %c0_0] : memref<8x256xbf16, #tpu.memory_space<vmem>>, vector<8x256xbf16>
    %c0_1 = arith.constant 0 : index
    %c0_2 = arith.constant 0 : index
    %1 = vector.load %arg2[%c0_1, %c0_2] : memref<96x32xbf16, #tpu.memory_space<vmem>>, vector<96x32xbf16>
    %2 = vector.extract_strided_slice %0 {offsets = [0, 0], sizes = [8, 96], strides = [1, 1]} : vector<8x256xbf16> to vector<8x96xbf16>
    %cst = arith.constant dense<0.000000e+00> : vector<8x32xf32>
    %3 = tpu.matmul %2, %1, %cst {dimension_numbers = #tpu.dot_dimension_numbers<[1], [0], [0], [1], [0, 0, 1, 1], [], []>} : vector<8x96xbf16>, vector<96x32xbf16>, vector<8x32xf32> -> vector<8x32xf32>
    %4 = vector.extract_strided_slice %0 {offsets = [0, 32], sizes = [8, 96], strides = [1, 1]} : vector<8x256xbf16> to vector<8x96xbf16>
    %cst_3 = arith.constant dense<0.000000e+00> : vector<8x32xf32>
    %5 = tpu.matmul %4, %1, %cst_3 {dimension_numbers = #tpu.dot_dimension_numbers<[1], [0], [0], [1], [0, 0, 1, 1], [], []>} : vector<8x96xbf16>, vector<96x32xbf16>, vector<8x32xf32> -> vector<8x32xf32>
    %6 = arith.maximumf %3, %5 : vector<8x32xf32>
    %7 = vector.extract_strided_slice %0 {offsets = [0, 64], sizes = [8, 96], strides = [1, 1]} : vector<8x256xbf16> to vector<8x96xbf16>
    %cst_4 = arith.constant dense<0.000000e+00> : vector<8x32xf32>
    %8 = tpu.matmul %7, %1, %cst_4 {dimension_numbers = #tpu.dot_dimension_numbers<[1], [0], [0], [1], [0, 0, 1, 1], [], []>} : vector<8x96xbf16>, vector<96x32xbf16>, vector<8x32xf32> -> vector<8x32xf32>
    %9 = arith.maximumf %6, %8 : vector<8x32xf32>
    %10 = vector.extract_strided_slice %0 {offsets = [0, 96], sizes = [8, 96], strides = [1, 1]} : vector<8x256xbf16> to vector<8x96xbf16>
    %cst_5 = arith.constant dense<0.000000e+00> : vector<8x32xf32>
    %11 = tpu.matmul %10, %1, %cst_5 {dimension_numbers = #tpu.dot_dimension_numbers<[1], [0], [0], [1], [0, 0, 1, 1], [], []>} : vector<8x96xbf16>, vector<96x32xbf16>, vector<8x32xf32> -> vector<8x32xf32>
    %12 = arith.maximumf %9, %11 : vector<8x32xf32>
    %13 = vector.extract_strided_slice %0 {offsets = [0, 128], sizes = [8, 96], strides = [1, 1]} : vector<8x256xbf16> to vector<8x96xbf16>
    %cst_6 = arith.constant dense<0.000000e+00> : vector<8x32xf32>
    %14 = tpu.matmul %13, %1, %cst_6 {dimension_numbers = #tpu.dot_dimension_numbers<[1], [0], [0], [1], [0, 0, 1, 1], [], []>} : vector<8x96xbf16>, vector<96x32xbf16>, vector<8x32xf32> -> vector<8x32xf32>
    %15 = arith.maximumf %12, %14 : vector<8x32xf32>
    %16 = vector.extract_strided_slice %0 {offsets = [0, 160], sizes = [8, 96], strides = [1, 1]} : vector<8x256xbf16> to vector<8x96xbf16>
    %cst_7 = arith.constant dense<0.000000e+00> : vector<8x32xf32>
    %17 = tpu.matmul %16, %1, %cst_7 {dimension_numbers = #tpu.dot_dimension_numbers<[1], [0], [0], [1], [0, 0, 1, 1], [], []>} : vector<8x96xbf16>, vector<96x32xbf16>, vector<8x32xf32> -> vector<8x32xf32>
    %18 = arith.maximumf %15, %17 : vector<8x32xf32>
    %c0_8 = arith.constant 0 : index
    %c0_9 = arith.constant 0 : index
    %19 = vector.load %arg3[%c0_8, %c0_9] : memref<1x32xf32, #tpu.memory_space<vmem>>, vector<1x32xf32>
    %20 = vector.broadcast %19 : vector<1x32xf32> to vector<8x32xf32>
    %21 = arith.addf %18, %20 : vector<8x32xf32>
    %cst_10 = arith.constant 0.000000e+00 : f32
    %22 = vector.broadcast %cst_10 : f32 to vector<8x32xf32>
    %23 = arith.maximumf %21, %22 : vector<8x32xf32>
    %24 = arith.truncf %23 : vector<8x32xf32> to vector<8x32xbf16>
    %c0_11 = arith.constant 0 : index
    %c0_12 = arith.constant 0 : index
    %25 = vector.load %arg4[%c0_11, %c0_12] : memref<32x32xbf16, #tpu.memory_space<vmem>>, vector<32x32xbf16>
    %cst_13 = arith.constant dense<0.000000e+00> : vector<8x32xf32>
    %26 = tpu.matmul %24, %25, %cst_13 {dimension_numbers = #tpu.dot_dimension_numbers<[1], [0], [0], [1], [0, 0, 1, 1], [], []>} : vector<8x32xbf16>, vector<32x32xbf16>, vector<8x32xf32> -> vector<8x32xf32>
    %c0_14 = arith.constant 0 : index
    %c0_15 = arith.constant 0 : index
    %27 = vector.load %arg5[%c0_14, %c0_15] : memref<1x32xf32, #tpu.memory_space<vmem>>, vector<1x32xf32>
    %28 = vector.broadcast %27 : vector<1x32xf32> to vector<8x32xf32>
    %29 = arith.addf %26, %28 : vector<8x32xf32>
    %cst_16 = arith.constant 0.000000e+00 : f32
    %30 = vector.broadcast %cst_16 : f32 to vector<8x32xf32>
    %31 = arith.maximumf %29, %30 : vector<8x32xf32>
    %32 = arith.truncf %31 : vector<8x32xf32> to vector<8x32xbf16>
    %c0_17 = arith.constant 0 : index
    %c0_18 = arith.constant 0 : index
    %33 = vector.load %arg6[%c0_17, %c0_18] : memref<32x128xbf16, #tpu.memory_space<vmem>>, vector<32x128xbf16>
    %cst_19 = arith.constant dense<0.000000e+00> : vector<8x128xf32>
    %34 = tpu.matmul %32, %33, %cst_19 {dimension_numbers = #tpu.dot_dimension_numbers<[1], [0], [0], [1], [0, 0, 1, 1], [], []>} : vector<8x32xbf16>, vector<32x128xbf16>, vector<8x128xf32> -> vector<8x128xf32>
    %c0_20 = arith.constant 0 : index
    %c0_21 = arith.constant 0 : index
    %35 = vector.load %arg7[%c0_20, %c0_21] : memref<1x128xf32, #tpu.memory_space<vmem>>, vector<1x128xf32>
    %36 = vector.broadcast %35 : vector<1x128xf32> to vector<8x128xf32>
    %37 = arith.addf %34, %36 : vector<8x128xf32>
    %cst_22 = arith.constant dense<0xFF800000> : vector<8xf32>
    %38 = vector.multi_reduction <maximumf>, %37, %cst_22 [1] : vector<8x128xf32> to vector<8xf32>
    %39 = vector.shape_cast %38 : vector<8xf32> to vector<8x1xf32>
    %40 = vector.broadcast %39 : vector<8x1xf32> to vector<8x128xf32>
    %41 = arith.subf %37, %40 : vector<8x128xf32>
    %42 = math.exp %41 : vector<8x128xf32>
    %cst_23 = arith.constant dense<0.000000e+00> : vector<8xf32>
    %43 = vector.multi_reduction <add>, %42, %cst_23 [1] : vector<8x128xf32> to vector<8xf32>
    %44 = vector.shape_cast %43 : vector<8xf32> to vector<8x1xf32>
    %45 = math.log %44 : vector<8x1xf32>
    %46 = vector.broadcast %39 : vector<8x1xf32> to vector<8x128xf32>
    %47 = arith.subf %37, %46 : vector<8x128xf32>
    %48 = vector.broadcast %45 : vector<8x1xf32> to vector<8x128xf32>
    %49 = arith.subf %47, %48 : vector<8x128xf32>
    %c0_24 = arith.constant 0 : index
    %c0_25 = arith.constant 0 : index
    %50 = vector.load %arg8[%c0_24, %c0_25] : memref<8x128xf32, #tpu.memory_space<vmem>>, vector<8x128xf32>
    tpu.vector_store %arg8[%c0_24, %c0_25], %49 {strides = array<i32>} : memref<8x128xf32, #tpu.memory_space<vmem>>, vector<8x128xf32>,
    return
  }
  func.func @transform_0(%arg0: i32) -> (i32, i32) {
    %c0_i32 = arith.constant 0 : i32
    %c0_i32_0 = arith.constant 0 : i32
    return %arg0, %c0_i32 : i32, i32
  }
  func.func @transform_1(%arg0: i32) -> (i32, i32) {
    %c0_i32 = arith.constant 0 : i32
    %c0_i32_0 = arith.constant 0 : i32
    %c0_i32_1 = arith.constant 0 : i32
    return %c0_i32, %c0_i32_0 : i32, i32
  }
  func.func @transform_2(%arg0: i32) -> (i32, i32) {
    %c0_i32 = arith.constant 0 : i32
    %c0_i32_0 = arith.constant 0 : i32
    %c0_i32_1 = arith.constant 0 : i32
    return %c0_i32, %c0_i32_0 : i32, i32
  }
  func.func @transform_3(%arg0: i32) -> (i32, i32) {
    %c0_i32 = arith.constant 0 : i32
    %c0_i32_0 = arith.constant 0 : i32
    %c0_i32_1 = arith.constant 0 : i32
    return %c0_i32, %c0_i32_0 : i32, i32
  }
  func.func @transform_4(%arg0: i32) -> (i32, i32) {
    %c0_i32 = arith.constant 0 : i32
    %c0_i32_0 = arith.constant 0 : i32
    %c0_i32_1 = arith.constant 0 : i32
    return %c0_i32, %c0_i32_0 : i32, i32
  }
  func.func @transform_5(%arg0: i32) -> (i32, i32) {
    %c0_i32 = arith.constant 0 : i32
    %c0_i32_0 = arith.constant 0 : i32
    %c0_i32_1 = arith.constant 0 : i32
    return %c0_i32, %c0_i32_0 : i32, i32
  }
  func.func @transform_6(%arg0: i32) -> (i32, i32) {
    %c0_i32 = arith.constant 0 : i32
    %c0_i32_0 = arith.constant 0 : i32
    %c0_i32_1 = arith.constant 0 : i32
    return %c0_i32, %c0_i32_0 : i32, i32
  }
  func.func @transform_7(%arg0: i32) -> (i32, i32) {
    %c0_i32 = arith.constant 0 : i32
    %c0_i32_0 = arith.constant 0 : i32
    return %arg0, %c0_i32 : i32, i32
  }
}

</mosaic_0001>

<llo_original>
// kernel: temp_classifier_forward.1
$region0: #{temp_classifier_forward.1}
  #allocation0 [shape = 'u32[]', space=smem, size = 0x4, offset = 0x4, fixed_abs, tag = 'smem constant byte address 0x4 - core index']
  #allocation1 [shape = 'u32[144,128]{1,0:T(1,128)}', space=vmem, size = 0x12000, scoped, tag = 'internal scratch']
  %s0 = inlined_call_operand.vmem [shape: bf16[8,256], index: 0, kind: input, shape index: {}]
  %s1 = inlined_call_operand.vmem [shape: bf16[96,32], index: 1, kind: input, shape index: {}]
  %s2 = inlined_call_operand.vmem [shape: f32[1,32], index: 2, kind: input, shape index: {}]
  %s3 = inlined_call_operand.vmem [shape: bf16[32,32], index: 3, kind: input, shape index: {}]
  %s4 = inlined_call_operand.vmem [shape: f32[1,32], index: 4, kind: input, shape index: {}]
  %s5 = inlined_call_operand.vmem [shape: bf16[32,128], index: 5, kind: input, shape index: {}]
  %s6 = inlined_call_operand.vmem [shape: f32[1,128], index: 6, kind: input, shape index: {}]
  %s7 = inlined_call_operand.vmem [shape: f32[8,128], index: 7, kind: output, shape index: {}]
  %s8 = sld [smem:[#allocation0]]
  $region38: #{temp_classifier_forward.1} parent=0
    _
  %s10 = ssub.s32 1, %s8
  %s11 = scalar_select 0, %s10, %s8
  // Predicated region
  $region2: #{temp_classifier_forward.1} parent=0 // pred_check
    _
  $region3: #{temp_classifier_forward.1} parent=0 // pred_check_branch
    %13 = sbr.rel (0) target = $region5
  $region4: #{temp_classifier_forward.1} parent=0 // pred_region
    _
  $region5: #{temp_classifier_forward.1} parent=0 // pred_fallthru
    _
  // Predicated region
  $region6: #{temp_classifier_forward.1} parent=0 // pred_check
    _
  $region7: #{temp_classifier_forward.1} parent=0 // pred_check_branch
    %15 = sbr.rel (0) target = $region9
  $region8: #{temp_classifier_forward.1} parent=0 // pred_region
    _
  $region9: #{temp_classifier_forward.1} parent=0 // pred_fallthru
    _
  // Predicated region
  $region10: #{temp_classifier_forward.1} parent=0 // pred_check
    _
  $region11: #{temp_classifier_forward.1} parent=0 // pred_check_branch
    %17 = sbr.rel (0) target = $region13
  $region12: #{temp_classifier_forward.1} parent=0 // pred_region
    _
  $region13: #{temp_classifier_forward.1} parent=0 // pred_fallthru
    _
  // Predicated region
  $region14: #{temp_classifier_forward.1} parent=0 // pred_check
    _
  $region15: #{temp_classifier_forward.1} parent=0 // pred_check_branch
    %19 = sbr.rel (0) target = $region17
  $region16: #{temp_classifier_forward.1} parent=0 // pred_region
    _
  $region17: #{temp_classifier_forward.1} parent=0 // pred_fallthru
    _
  // Predicated region
  $region18: #{temp_classifier_forward.1} parent=0 // pred_check
    _
  $region19: #{temp_classifier_forward.1} parent=0 // pred_check_branch
    %21 = sbr.rel (0) target = $region21
  $region20: #{temp_classifier_forward.1} parent=0 // pred_region
    _
  $region21: #{temp_classifier_forward.1} parent=0 // pred_fallthru
    _
  // Predicated region
  $region22: #{temp_classifier_forward.1} parent=0 // pred_check
    _
  $region23: #{temp_classifier_forward.1} parent=0 // pred_check_branch
    %23 = sbr.rel (0) target = $region25
  $region24: #{temp_classifier_forward.1} parent=0 // pred_region
    _
  $region25: #{temp_classifier_forward.1} parent=0 // pred_fallthru
    _
  // Predicated region
  $region26: #{temp_classifier_forward.1} parent=0 // pred_check
    _
  $region27: #{temp_classifier_forward.1} parent=0 // pred_check_branch
    %25 = sbr.rel (0) target = $region29
  $region28: #{temp_classifier_forward.1} parent=0 // pred_region
    _
  $region29: #{temp_classifier_forward.1} parent=0 // pred_fallthru
    _
  %v27 = vld [vmem:[%s0] sm:$0xff]
  %v28 = vld [vmem:[%s1] sm:$0xf]
  %v29 = vld [vmem:[%s1 + $0x4] sm:$0xf]
  %v30 = vld [vmem:[%s1 + $0x8] sm:$0xf]
  %v31 = vld [vmem:[%s1 + $0xc] sm:$0xf]
  %v32 = vld [vmem:[%s1 + $0x10] sm:$0xf]
  %v33 = vld [vmem:[%s1 + $0x14] sm:$0xf]
  %v34 = vld [vmem:[%s1 + $0x18] sm:$0xf]
  %v35 = vld [vmem:[%s1 + $0x1c] sm:$0xf]
  %v36 = vld [vmem:[%s1 + $0x20] sm:$0xf]
  %v37 = vld [vmem:[%s1 + $0x24] sm:$0xf]
  %v38 = vld [vmem:[%s1 + $0x28] sm:$0xf]
  %v39 = vld [vmem:[%s1 + $0x2c] sm:$0xf]
  %v52 = vunpack.c.l.b16 %v28
  %v53 = vunpack.c.l.b16 %v29
  %v54 = vunpack.c.l.b16 %v30
  %v55 = vunpack.c.l.b16 %v31
  %v56 = vunpack.c.l.b16 %v32
  %v57 = vunpack.c.l.b16 %v33
  %v58 = vunpack.c.l.b16 %v34
  %v59 = vunpack.c.l.b16 %v35
  %v60 = vunpack.c.l.b16 %v36
  %v61 = vunpack.c.l.b16 %v37
  %v62 = vunpack.c.l.b16 %v38
  %v63 = vunpack.c.l.b16 %v39
  %v64 = vpack.c.b16 %v53, %v52
  %v65 = vpack.c.b16 %v55, %v54
  %v66 = vpack.c.b16 %v57, %v56
  %v67 = vpack.c.b16 %v59, %v58
  %v68 = vpack.c.b16 %v61, %v60
  %v69 = vpack.c.b16 %v63, %v62
  %vm76 = vcmask 785408
  %v78 = vsel %vm76, %v27, 0
  %80 = vmatprep.subr.bf16.mxu0 0
  %81 = vmatpush1.bf16.msra.mxu0 %v64
  %82 = vmatprep.subr.bf16.mxu0 0
  %83 = vmatpush1.bf16.msra.mxu0 %v65
  %84 = vmatprep.subr.bf16.mxu0 0
  %85 = vmatpush1.bf16.msra.mxu0 %v66
  %86 = vmatprep.subr.bf16.mxu0 0
  %87 = vmatpush1.bf16.msra.mxu0 %v67
  %88 = vmatprep.subr.bf16.mxu0 0
  %89 = vmatpush1.bf16.msra.mxu0 %v68
  %90 = vmatprep.subr.bf16.mxu0 0
  %91 = vmatpush1.bf16.msra.mxu0 %v69
  %92 = vmatprep.subr.bf16.mxu0 0
  %93 = vmatpush1.bf16.msra.mxu0 0
  %94 = vmatprep.subr.bf16.mxu0 0
  %95 = vmatpush1.bf16.msra.mxu0 0
  %96 = vmatprep.subr.bf16.mxu0 0
  %97 = vmatpush1.bf16.msra.mxu0 0
  %98 = vmatprep.subr.bf16.mxu0 0
  %99 = vmatpush1.bf16.msra.mxu0 0
  %100 = vmatprep.subr.bf16.mxu0 0
  %101 = vmatpush1.bf16.msra.mxu0 0
  %102 = vmatprep.subr.bf16.mxu0 0
  %103 = vmatpush1.bf16.msra.mxu0 0
  %104 = vmatprep.subr.bf16.mxu0 0
  %105 = vmatpush1.bf16.msra.mxu0 0
  %106 = vmatprep.subr.bf16.mxu0 0
  %107 = vmatpush1.bf16.msra.mxu0 0
  %108 = vmatprep.subr.bf16.mxu0 0
  %109 = vmatpush1.bf16.msra.mxu0 0
  %110 = vmatprep.subr.bf16.mxu0 0
  %111 = vmatpush1.bf16.msra.mxu0 0
  %112 = vmatprep.mubr.bf16.mxu0 0
  %113 = vmatmul.mubr.bf16.gmra.mrb[0].mxu0 %v78
  %v114 = vpop.f32.mrb[0].mxu0
  %v115 = vadd.f32 0.0, %v114
  %v116 = vpop.f32.mrb[0].mxu0
  %v117 = vpop.f32.mrb[0].mxu0
  %v118 = vpop.f32.mrb[0].mxu0
  %119 = vdwg.mxu0
  %v121 = vunpack.c.l.b16 %v27
  %v122 = vpack.c.b16 %v121, %v121
  %123 = vrot.lane.b32.xlu0 %v122, 96
  %v124 = vpop.permute.xlu0 %123
  %v126 = vsel %vm76, %v124, 0
  %128 = vmatprep.subr.bf16.mxu0 0
  %129 = vmatpush1.bf16.msra.mxu0 %v64
  %130 = vmatprep.subr.bf16.mxu0 0
  %131 = vmatpush1.bf16.msra.mxu0 %v65
  %132 = vmatprep.subr.bf16.mxu0 0
  %133 = vmatpush1.bf16.msra.mxu0 %v66
  %134 = vmatprep.subr.bf16.mxu0 0
  %135 = vmatpush1.bf16.msra.mxu0 %v67
  %136 = vmatprep.subr.bf16.mxu0 0
  %137 = vmatpush1.bf16.msra.mxu0 %v68
  %138 = vmatprep.subr.bf16.mxu0 0
  %139 = vmatpush1.bf16.msra.mxu0 %v69
  %140 = vmatprep.subr.bf16.mxu0 0
  %141 = vmatpush1.bf16.msra.mxu0 0
  %142 = vmatprep.subr.bf16.mxu0 0
  %143 = vmatpush1.bf16.msra.mxu0 0
  %144 = vmatprep.subr.bf16.mxu0 0
  %145 = vmatpush1.bf16.msra.mxu0 0
  %146 = vmatprep.subr.bf16.mxu0 0
  %147 = vmatpush1.bf16.msra.mxu0 0
  %148 = vmatprep.subr.bf16.mxu0 0
  %149 = vmatpush1.bf16.msra.mxu0 0
  %150 = vmatprep.subr.bf16.mxu0 0
  %151 = vmatpush1.bf16.msra.mxu0 0
  %152 = vmatprep.subr.bf16.mxu0 0
  %153 = vmatpush1.bf16.msra.mxu0 0
  %154 = vmatprep.subr.bf16.mxu0 0
  %155 = vmatpush1.bf16.msra.mxu0 0
  %156 = vmatprep.subr.bf16.mxu0 0
  %157 = vmatpush1.bf16.msra.mxu0 0
  %158 = vmatprep.subr.bf16.mxu0 0
  %159 = vmatpush1.bf16.msra.mxu0 0
  %160 = vmatprep.mubr.bf16.mxu0 0
  %161 = vmatmul.mubr.bf16.gmra.mrb[0].mxu0 %v126
  %v162 = vpop.f32.mrb[0].mxu0
  %v163 = vadd.f32 0.0, %v162
  %v164 = vpop.f32.mrb[0].mxu0
  %v165 = vpop.f32.mrb[0].mxu0
  %v166 = vpop.f32.mrb[0].mxu0
  %167 = vdwg.mxu0
  %v168 = vmax.f32 %v115, %v163
  %v169 = vunpack.c.h.b16 %v27
  %v170 = vpack.c.b16 %v169, %v169
  %171 = vrot.lane.b32.xlu0 %v122, 64
  %v172 = vpop.permute.xlu0 %171
  %173 = vrot.lane.b32.xlu0 %v170, 64
  %v174 = vpop.permute.xlu0 %173
  %vm175 = vcmask 523264
  %v176 = vsel %vm175, %v172, %v174
  %v178 = vsel %vm76, %v176, 0
  %180 = vmatprep.subr.bf16.mxu0 0
  %181 = vmatpush1.bf16.msra.mxu0 %v64
  %182 = vmatprep.subr.bf16.mxu0 0
  %183 = vmatpush1.bf16.msra.mxu0 %v65
  %184 = vmatprep.subr.bf16.mxu0 0
  %185 = vmatpush1.bf16.msra.mxu0 %v66
  %186 = vmatprep.subr.bf16.mxu0 0
  %187 = vmatpush1.bf16.msra.mxu0 %v67
  %188 = vmatprep.subr.bf16.mxu0 0
  %189 = vmatpush1.bf16.msra.mxu0 %v68
  %190 = vmatprep.subr.bf16.mxu0 0
  %191 = vmatpush1.bf16.msra.mxu0 %v69
  %192 = vmatprep.subr.bf16.mxu0 0
  %193 = vmatpush1.bf16.msra.mxu0 0
  %194 = vmatprep.subr.bf16.mxu0 0
  %195 = vmatpush1.bf16.msra.mxu0 0
  %196 = vmatprep.subr.bf16.mxu0 0
  %197 = vmatpush1.bf16.msra.mxu0 0
  %198 = vmatprep.subr.bf16.mxu0 0
  %199 = vmatpush1.bf16.msra.mxu0 0
  %200 = vmatprep.subr.bf16.mxu0 0
  %201 = vmatpush1.bf16.msra.mxu0 0
  %202 = vmatprep.subr.bf16.mxu0 0
  %203 = vmatpush1.bf16.msra.mxu0 0
  %204 = vmatprep.subr.bf16.mxu0 0
  %205 = vmatpush1.bf16.msra.mxu0 0
  %206 = vmatprep.subr.bf16.mxu0 0
  %207 = vmatpush1.bf16.msra.mxu0 0
  %208 = vmatprep.subr.bf16.mxu0 0
  %209 = vmatpush1.bf16.msra.mxu0 0
  %210 = vmatprep.subr.bf16.mxu0 0
  %211 = vmatpush1.bf16.msra.mxu0 0
  %212 = vmatprep.mubr.bf16.mxu0 0
  %213 = vmatmul.mubr.bf16.gmra.mrb[0].mxu0 %v178
  %v214 = vpop.f32.mrb[0].mxu0
  %v215 = vadd.f32 0.0, %v214
  %v216 = vpop.f32.mrb[0].mxu0
  %v217 = vpop.f32.mrb[0].mxu0
  %v218 = vpop.f32.mrb[0].mxu0
  %219 = vdwg.mxu0
  %v220 = vmax.f32 %v168, %v215
  %221 = vrot.lane.b32.xlu0 %v122, 32
  %v222 = vpop.permute.xlu0 %221
  %223 = vrot.lane.b32.xlu0 %v170, 32
  %v224 = vpop.permute.xlu0 %223
  %vm225 = vcmask 261120
  %v226 = vsel %vm225, %v222, %v224
  %v228 = vsel %vm76, %v226, 0
  %230 = vmatprep.subr.bf16.mxu0 0
  %231 = vmatpush1.bf16.msra.mxu0 %v64
  %232 = vmatprep.subr.bf16.mxu0 0
  %233 = vmatpush1.bf16.msra.mxu0 %v65
  %234 = vmatprep.subr.bf16.mxu0 0
  %235 = vmatpush1.bf16.msra.mxu0 %v66
  %236 = vmatprep.subr.bf16.mxu0 0
  %237 = vmatpush1.bf16.msra.mxu0 %v67
  %238 = vmatprep.subr.bf16.mxu0 0
  %239 = vmatpush1.bf16.msra.mxu0 %v68
  %240 = vmatprep.subr.bf16.mxu0 0
  %241 = vmatpush1.bf16.msra.mxu0 %v69
  %242 = vmatprep.subr.bf16.mxu0 0
  %243 = vmatpush1.bf16.msra.mxu0 0
  %244 = vmatprep.subr.bf16.mxu0 0
  %245 = vmatpush1.bf16.msra.mxu0 0
  %246 = vmatprep.subr.bf16.mxu0 0
  %247 = vmatpush1.bf16.msra.mxu0 0
  %248 = vmatprep.subr.bf16.mxu0 0
  %249 = vmatpush1.bf16.msra.mxu0 0
  %250 = vmatprep.subr.bf16.mxu0 0
  %251 = vmatpush1.bf16.msra.mxu0 0
  %252 = vmatprep.subr.bf16.mxu0 0
  %253 = vmatpush1.bf16.msra.mxu0 0
  %254 = vmatprep.subr.bf16.mxu0 0
  %255 = vmatpush1.bf16.msra.mxu0 0
  %256 = vmatprep.subr.bf16.mxu0 0
  %257 = vmatpush1.bf16.msra.mxu0 0
  %258 = vmatprep.subr.bf16.mxu0 0
  %259 = vmatpush1.bf16.msra.mxu0 0
  %260 = vmatprep.subr.bf16.mxu0 0
  %261 = vmatpush1.bf16.msra.mxu0 0
  %262 = vmatprep.mubr.bf16.mxu0 0
  %263 = vmatmul.mubr.bf16.gmra.mrb[0].mxu0 %v228
  %v264 = vpop.f32.mrb[0].mxu0
  %v265 = vadd.f32 0.0, %v264
  %v266 = vpop.f32.mrb[0].mxu0
  %v267 = vpop.f32.mrb[0].mxu0
  %v268 = vpop.f32.mrb[0].mxu0
  %269 = vdwg.mxu0
  %v270 = vmax.f32 %v220, %v265
  %v272 = vsel %vm76, %v170, 0
  %274 = vmatprep.subr.bf16.mxu0 0
  %275 = vmatpush1.bf16.msra.mxu0 %v64
  %276 = vmatprep.subr.bf16.mxu0 0
  %277 = vmatpush1.bf16.msra.mxu0 %v65
  %278 = vmatprep.subr.bf16.mxu0 0
  %279 = vmatpush1.bf16.msra.mxu0 %v66
  %280 = vmatprep.subr.bf16.mxu0 0
  %281 = vmatpush1.bf16.msra.mxu0 %v67
  %282 = vmatprep.subr.bf16.mxu0 0
  %283 = vmatpush1.bf16.msra.mxu0 %v68
  %284 = vmatprep.subr.bf16.mxu0 0
  %285 = vmatpush1.bf16.msra.mxu0 %v69
  %286 = vmatprep.subr.bf16.mxu0 0
  %287 = vmatpush1.bf16.msra.mxu0 0
  %288 = vmatprep.subr.bf16.mxu0 0
  %289 = vmatpush1.bf16.msra.mxu0 0
  %290 = vmatprep.subr.bf16.mxu0 0
  %291 = vmatpush1.bf16.msra.mxu0 0
  %292 = vmatprep.subr.bf16.mxu0 0
  %293 = vmatpush1.bf16.msra.mxu0 0
  %294 = vmatprep.subr.bf16.mxu0 0
  %295 = vmatpush1.bf16.msra.mxu0 0
  %296 = vmatprep.subr.bf16.mxu0 0
  %297 = vmatpush1.bf16.msra.mxu0 0
  %298 = vmatprep.subr.bf16.mxu0 0
  %299 = vmatpush1.bf16.msra.mxu0 0
  %300 = vmatprep.subr.bf16.mxu0 0
  %301 = vmatpush1.bf16.msra.mxu0 0
  %302 = vmatprep.subr.bf16.mxu0 0
  %303 = vmatpush1.bf16.msra.mxu0 0
  %304 = vmatprep.subr.bf16.mxu0 0
  %305 = vmatpush1.bf16.msra.mxu0 0
  %306 = vmatprep.mubr.bf16.mxu0 0
  %307 = vmatmul.mubr.bf16.gmra.mrb[0].mxu0 %v272
  %v308 = vpop.f32.mrb[0].mxu0
  %v309 = vadd.f32 0.0, %v308
  %v310 = vpop.f32.mrb[0].mxu0
  %v311 = vpop.f32.mrb[0].mxu0
  %v312 = vpop.f32.mrb[0].mxu0
  %313 = vdwg.mxu0
  %v314 = vmax.f32 %v270, %v309
  %315 = vrot.lane.b32.xlu0 %v170, 96
  %v316 = vpop.permute.xlu0 %315
  %v318 = vsel %vm76, %v316, 0
  %320 = vmatprep.subr.bf16.mxu0 0
  %321 = vmatpush1.bf16.msra.mxu0 %v64
  %322 = vmatprep.subr.bf16.mxu0 0
  %323 = vmatpush1.bf16.msra.mxu0 %v65
  %324 = vmatprep.subr.bf16.mxu0 0
  %325 = vmatpush1.bf16.msra.mxu0 %v66
  %326 = vmatprep.subr.bf16.mxu0 0
  %327 = vmatpush1.bf16.msra.mxu0 %v67
  %328 = vmatprep.subr.bf16.mxu0 0
  %329 = vmatpush1.bf16.msra.mxu0 %v68
  %330 = vmatprep.subr.bf16.mxu0 0
  %331 = vmatpush1.bf16.msra.mxu0 %v69
  %332 = vmatprep.subr.bf16.mxu0 0
  %333 = vmatpush1.bf16.msra.mxu0 0
  %334 = vmatprep.subr.bf16.mxu0 0
  %335 = vmatpush1.bf16.msra.mxu0 0
  %336 = vmatprep.subr.bf16.mxu0 0
  %337 = vmatpush1.bf16.msra.mxu0 0
  %338 = vmatprep.subr.bf16.mxu0 0
  %339 = vmatpush1.bf16.msra.mxu0 0
  %340 = vmatprep.subr.bf16.mxu0 0
  %341 = vmatpush1.bf16.msra.mxu0 0
  %342 = vmatprep.subr.bf16.mxu0 0
  %343 = vmatpush1.bf16.msra.mxu0 0
  %344 = vmatprep.subr.bf16.mxu0 0
  %345 = vmatpush1.bf16.msra.mxu0 0
  %346 = vmatprep.subr.bf16.mxu0 0
  %347 = vmatpush1.bf16.msra.mxu0 0
  %348 = vmatprep.subr.bf16.mxu0 0
  %349 = vmatpush1.bf16.msra.mxu0 0
  %350 = vmatprep.subr.bf16.mxu0 0
  %351 = vmatpush1.bf16.msra.mxu0 0
  %352 = vmatprep.mubr.bf16.mxu0 0
  %353 = vmatmul.mubr.bf16.gmra.mrb[0].mxu0 %v318
  %v354 = vpop.f32.mrb[0].mxu0
  %v355 = vadd.f32 0.0, %v354
  %v356 = vpop.f32.mrb[0].mxu0
  %v357 = vpop.f32.mrb[0].mxu0
  %v358 = vpop.f32.mrb[0].mxu0
  %359 = vdwg.mxu0
  %v360 = vmax.f32 %v314, %v355
  %v361 = vld [vmem:[%s2] sm:$0x1]
  %v363 = vlaneseq
  %v364 = vshrl.u32 %v363, 7
  %v365 = vsub.s32 0, %v364
  %v366 = vrot.slane %v361, %v365
  %v368 = vadd.f32 %v360, %v366
  %v369 = vmax.f32 %v368, 0.0
  %v370 = vpack.c.bf16 %v369, %v369
  %v371 = vld [vmem:[%s3] sm:$0xf]
  %v372 = vld [vmem:[%s3 + $0x4] sm:$0xf]
  %v373 = vld [vmem:[%s3 + $0x8] sm:$0xf]
  %v374 = vld [vmem:[%s3 + $0xc] sm:$0xf]
  %v375 = vld [vmem:[%s4] sm:$0x1]
  %v377 = vlaneseq
  %v378 = vshrl.u32 %v377, 7
  %v379 = vsub.s32 0, %v378
  %v380 = vrot.slane %v375, %v379
  %v386 = vunpack.c.l.b16 %v371
  %v387 = vunpack.c.l.b16 %v372
  %v388 = vunpack.c.l.b16 %v373
  %v389 = vunpack.c.l.b16 %v374
  %v390 = vpack.c.b16 %v387, %v386
  %v391 = vpack.c.b16 %v389, %v388
  %vm394 = vcmask 261120
  %v396 = vsel %vm394, %v370, 0
  %398 = vmatprep.subr.bf16.mxu0 0
  %399 = vmatpush1.bf16.msra.mxu0 %v390
  %400 = vmatprep.subr.bf16.mxu0 0
  %401 = vmatpush1.bf16.msra.mxu0 %v391
  %402 = vmatprep.subr.bf16.mxu0 0
  %403 = vmatpush1.bf16.msra.mxu0 0
  %404 = vmatprep.subr.bf16.mxu0 0
  %405 = vmatpush1.bf16.msra.mxu0 0
  %406 = vmatprep.subr.bf16.mxu0 0
  %407 = vmatpush1.bf16.msra.mxu0 0
  %408 = vmatprep.subr.bf16.mxu0 0
  %409 = vmatpush1.bf16.msra.mxu0 0
  %410 = vmatprep.subr.bf16.mxu0 0
  %411 = vmatpush1.bf16.msra.mxu0 0
  %412 = vmatprep.subr.bf16.mxu0 0
  %413 = vmatpush1.bf16.msra.mxu0 0
  %414 = vmatprep.subr.bf16.mxu0 0
  %415 = vmatpush1.bf16.msra.mxu0 0
  %416 = vmatprep.subr.bf16.mxu0 0
  %417 = vmatpush1.bf16.msra.mxu0 0
  %418 = vmatprep.subr.bf16.mxu0 0
  %419 = vmatpush1.bf16.msra.mxu0 0
  %420 = vmatprep.subr.bf16.mxu0 0
  %421 = vmatpush1.bf16.msra.mxu0 0
  %422 = vmatprep.subr.bf16.mxu0 0
  %423 = vmatpush1.bf16.msra.mxu0 0
  %424 = vmatprep.subr.bf16.mxu0 0
  %425 = vmatpush1.bf16.msra.mxu0 0
  %426 = vmatprep.subr.bf16.mxu0 0
  %427 = vmatpush1.bf16.msra.mxu0 0
  %428 = vmatprep.subr.bf16.mxu0 0
  %429 = vmatpush1.bf16.msra.mxu0 0
  %430 = vmatprep.mubr.bf16.mxu0 0
  %431 = vmatmul.mubr.bf16.gmra.mrb[0].mxu0 %v396
  %v432 = vpop.f32.mrb[0].mxu0
  %v433 = vadd.f32 %v380, %v432
  %v434 = vpop.f32.mrb[0].mxu0
  %v435 = vpop.f32.mrb[0].mxu0
  %v436 = vpop.f32.mrb[0].mxu0
  %437 = vdwg.mxu0
  %v438 = vmax.f32 %v433, 0.0
  %v439 = vpack.c.bf16 %v438, %v438
  %v440 = vld [vmem:[%s5] sm:$0xf]
  %v441 = vld [vmem:[%s5 + $0x4] sm:$0xf]
  %v442 = vld [vmem:[%s5 + $0x8] sm:$0xf]
  %v443 = vld [vmem:[%s5 + $0xc] sm:$0xf]
  %v444 = vld [vmem:[%s6] sm:$0x1]
  %v446 = vlaneseq
  %v447 = vshrl.u32 %v446, 7
  %v448 = vsub.s32 0, %v447
  %v449 = vrot.slane %v444, %v448
  %v455 = vunpack.c.l.b16 %v440
  %v456 = vunpack.c.l.b16 %v441
  %v457 = vunpack.c.l.b16 %v442
  %v458 = vunpack.c.l.b16 %v443
  %v459 = vpack.c.b16 %v456, %v455
  %v460 = vpack.c.b16 %v458, %v457
  %v464 = vsel %vm394, %v439, 0
  %466 = vmatprep.subr.bf16.mxu0 0
  %467 = vmatpush1.bf16.msra.mxu0 %v459
  %468 = vmatprep.subr.bf16.mxu0 0
  %469 = vmatpush1.bf16.msra.mxu0 %v460
  %470 = vmatprep.subr.bf16.mxu0 0
  %471 = vmatpush1.bf16.msra.mxu0 0
  %472 = vmatprep.subr.bf16.mxu0 0
  %473 = vmatpush1.bf16.msra.mxu0 0
  %474 = vmatprep.subr.bf16.mxu0 0
  %475 = vmatpush1.bf16.msra.mxu0 0
  %476 = vmatprep.subr.bf16.mxu0 0
  %477 = vmatpush1.bf16.msra.mxu0 0
  %478 = vmatprep.subr.bf16.mxu0 0
  %479 = vmatpush1.bf16.msra.mxu0 0
  %480 = vmatprep.subr.bf16.mxu0 0
  %481 = vmatpush1.bf16.msra.mxu0 0
  %482 = vmatprep.subr.bf16.mxu0 0
  %483 = vmatpush1.bf16.msra.mxu0 0
  %484 = vmatprep.subr.bf16.mxu0 0
  %485 = vmatpush1.bf16.msra.mxu0 0
  %486 = vmatprep.subr.bf16.mxu0 0
  %487 = vmatpush1.bf16.msra.mxu0 0
  %488 = vmatprep.subr.bf16.mxu0 0
  %489 = vmatpush1.bf16.msra.mxu0 0
  %490 = vmatprep.subr.bf16.mxu0 0
  %491 = vmatpush1.bf16.msra.mxu0 0
  %492 = vmatprep.subr.bf16.mxu0 0
  %493 = vmatpush1.bf16.msra.mxu0 0
  %494 = vmatprep.subr.bf16.mxu0 0
  %495 = vmatpush1.bf16.msra.mxu0 0
  %496 = vmatprep.subr.bf16.mxu0 0
  %497 = vmatpush1.bf16.msra.mxu0 0
  %498 = vmatprep.mubr.bf16.mxu0 0
  %499 = vmatmul.mubr.bf16.gmra.mrb[0].mxu0 %v464
  %v500 = vpop.f32.mrb[0].mxu0
  %v501 = vadd.f32 %v449, %v500
  %v502 = vpop.f32.mrb[0].mxu0
  %v503 = vpop.f32.mrb[0].mxu0
  %v504 = vpop.f32.mrb[0].mxu0
  %505 = vdwg.mxu0
  %506 = vmax.xlane.f32.xlu0 %v501
  %v507 = vpop.xlane.xlu0 %506
  %v508 = vsub.f32 %v501, %v507
  %v509 = vmul.f32 %v508, 1.442695
  %v510 = vpow.pop %v509
  %511 = vadd.xlane.f32.xlu0 %v510
  %v512 = vpop.xlane.xlu0 %511
  %v513 = vlog2.pop %v512
  %v514 = vmul.f32 %v513, 0.6931472
  %v515 = vsub.f32 %v508, %v514
  %516 = vst [vmem:[%s7] sm:$0xff] %v515
  // Predicated region
  $region30: #{temp_classifier_forward.1} parent=0 // pred_check
    _
  $region31: #{temp_classifier_forward.1} parent=0 // pred_check_branch
    %518 = sbr.rel (0) target = $region33
  $region32: #{temp_classifier_forward.1} parent=0 // pred_region
    _
  $region33: #{temp_classifier_forward.1} parent=0 // pred_fallthru
    _
  // Predicated region
  $region34: #{temp_classifier_forward.1} parent=0 // pred_check
    _
  $region35: #{temp_classifier_forward.1} parent=0 // pred_check_branch
    %520 = sbr.rel (0) target = $region37
  $region36: #{temp_classifier_forward.1} parent=0 // pred_region
    _
  $region37: #{temp_classifier_forward.1} parent=0 // pred_fallthru
    _

</llo_original>
